<compile_context>
chip_gen: v7x
topology: tpu7x:2x2x1
jax: 0.10.0
libtpu: 0.0.40
codegen_flags: <defaults>
</compile_context>

<pallas_src>
import functools
import math

import jax
import jax.numpy as jnp
from jax.experimental import pallas as pl
from jax.experimental.pallas import tpu as pltpu


# -----------------------------------------------------------------------------
# Per-generation scoped-VMEM budget
# -----------------------------------------------------------------------------
@functools.lru_cache(maxsize=None)
def _vmem_limit():
    default = 64 * 1024 * 1024
    try:
        info = pltpu.get_tpu_info()
    except Exception:
        return default
    cap = getattr(info, "vmem_capacity_bytes", None)
    if not cap:
        return default
    # ~75% of physical: ~96 MiB on v5e/v6e (128 MiB), ~48 MiB on v7x (64 MiB)
    return int(min(cap * 3 // 4, 100 * 1024 * 1024))


# -----------------------------------------------------------------------------
# Tiled linear kernel: out = x @ w   (x: (M,K) bf16, w: (K,N) bf16, bias=False)
# -----------------------------------------------------------------------------
def _matmul_kernel(x_ref, w_ref, o_ref):
    o_ref[...] = jnp.dot(
        x_ref[...], w_ref[...], preferred_element_type=jnp.float32
    ).astype(o_ref.dtype)


def linear(x, w, *, out_dtype=jnp.bfloat16, tile_m=512, tile_n=512):
    """x: (M, K) bf16, w: (K, N) bf16 -> (M, N) out_dtype, tiled over M and N."""
    M, K = x.shape
    N = w.shape[1]
    tm = M if M <= tile_m else tile_m
    tn = N if N <= tile_n else tile_n
    grid = (pl.cdiv(M, tm), pl.cdiv(N, tn))
    return pl.pallas_call(
        _matmul_kernel,
        out_shape=jax.ShapeDtypeStruct((M, N), out_dtype),
        grid=grid,
        in_specs=[
            pl.BlockSpec((tm, K), lambda i, j: (i, 0)),
            pl.BlockSpec((K, tn), lambda i, j: (0, j)),
        ],
        out_specs=pl.BlockSpec((tm, tn), lambda i, j: (i, j)),
        compiler_params=pltpu.CompilerParams(
            dimension_semantics=("parallel", "parallel"),
            vmem_limit_bytes=_vmem_limit(),
        ),
    )(x, w)


# -----------------------------------------------------------------------------
# Flash-style attention kernel.
#   grid = (B, Sq tiles, Sk tiles), last axis "arbitrary" (online softmax).
#   q/k/v arrive head-merged (1, tile, H) in bf16; q already carries the
#   1/sqrt(head_dim) scale (folded into W_q).  Per-head m/l and the (tq, H)
#   accumulator live in VMEM scratch; the output is ONE lane-dense bf16 store.
#   valid_lens (per batch) comes via scalar prefetch (SMEM).
# -----------------------------------------------------------------------------
def _flash_attn_kernel(vl_ref, q_ref, k_ref, v_ref, o_ref,
                       m_scratch, l_scratch, acc_scratch,
                       *, num_heads, head_dim, block_k):
    b = pl.program_id(0)
    ki = pl.program_id(2)
    num_k = pl.num_programs(2)
    vl = vl_ref[b]

    @pl.when(ki == 0)
    def _():
        m_scratch[...] = jnp.full(m_scratch.shape, -jnp.inf, m_scratch.dtype)
        l_scratch[...] = jnp.zeros(l_scratch.shape, l_scratch.dtype)
        acc_scratch[...] = jnp.zeros(acc_scratch.shape, acc_scratch.dtype)

    q = q_ref[0]          # (tq, H) bf16, pre-scaled
    k = k_ref[0]          # (tk, H) bf16
    v = v_ref[0]          # (tk, H) bf16
    tq = q.shape[0]
    tk = k.shape[0]

    # key-position mask for this K tile, shared by every head.
    # PyTorch-style masked softmax: masked logits set to -1e6 (not -inf).
    col = jax.lax.broadcasted_iota(jnp.int32, (tq, tk), 1) + ki * block_k
    keep = col < vl

    for h in range(num_heads):                      # static unroll over heads
        lo = h * head_dim
        hi = lo + head_dim
        qh = q[:, lo:hi]
        kh = k[:, lo:hi]
        vh = v[:, lo:hi]

        s = jax.lax.dot_general(
            qh, kh, (((1,), (1,)), ((), ())),
            preferred_element_type=jnp.float32,
        )
        s = jnp.where(keep, s, jnp.float32(-1000000.0))

        m_prev = m_scratch[:, h:h + 1]              # (tq, 1)
        l_prev = l_scratch[:, h:h + 1]
        m_new = jnp.maximum(m_prev, jnp.max(s, axis=-1, keepdims=True))
        alpha = jnp.exp(m_prev - m_new)
        p = jnp.exp(s - m_new)

        l_scratch[:, h:h + 1] = alpha * l_prev + jnp.sum(p, axis=-1, keepdims=True)
        acc_scratch[:, lo:hi] = (
            alpha * acc_scratch[:, lo:hi]
            + jnp.dot(p.astype(jnp.bfloat16), vh,
                      preferred_element_type=jnp.float32)
        )
        m_scratch[:, h:h + 1] = m_new

    @pl.when(ki == num_k - 1)
    def _():
        # normalize each head's slice in the f32 scratch (exact division to
        # match the reference), then one head-merged lane-dense store.
        for h in range(num_heads):
            lo = h * head_dim
            hi = lo + head_dim
            inv = 1.0 / l_scratch[:, h:h + 1]
            acc_scratch[:, lo:hi] = acc_scratch[:, lo:hi] * inv
        o_ref[0] = acc_scratch[...].astype(o_ref.dtype)


def dot_product_attention(q_proj, k_proj, v_proj, valid_lens, num_heads,
                          *, tile_q=512, tile_k=512):
    """q_proj: (B, Sq, H) bf16, k/v_proj: (B, Sk, H) bf16, valid_lens: (B,) int32.
    Returns (B, Sq, H) bf16, head-merged (q_proj must carry the 1/sqrt(hd) scale)."""
    B, Sq, H = q_proj.shape
    Sk = k_proj.shape[1]
    head_dim = H // num_heads

    tq = Sq if Sq <= tile_q else tile_q
    tk = Sk if Sk <= tile_k else tile_k
    grid = (B, pl.cdiv(Sq, tq), pl.cdiv(Sk, tk))

    kernel = functools.partial(
        _flash_attn_kernel, num_heads=num_heads, head_dim=head_dim, block_k=tk)

    grid_spec = pltpu.PrefetchScalarGridSpec(
        num_scalar_prefetch=1,
        grid=grid,
        in_specs=[
            pl.BlockSpec((1, tq, H), lambda b, qi, ki, vl: (b, qi, 0)),
            pl.BlockSpec((1, tk, H), lambda b, qi, ki, vl: (b, ki, 0)),
            pl.BlockSpec((1, tk, H), lambda b, qi, ki, vl: (b, ki, 0)),
        ],
        out_specs=pl.BlockSpec((1, tq, H), lambda b, qi, ki, vl: (b, qi, 0)),
        scratch_shapes=[
            pltpu.VMEM((tq, num_heads), jnp.float32),   # running max (per head)
            pltpu.VMEM((tq, num_heads), jnp.float32),   # running denom (per head)
            pltpu.VMEM((tq, H), jnp.float32),           # head-merged accumulator
        ],
    )
    return pl.pallas_call(
        kernel,
        out_shape=jax.ShapeDtypeStruct((B, Sq, H), jnp.bfloat16),
        grid_spec=grid_spec,
        compiler_params=pltpu.CompilerParams(
            dimension_semantics=("parallel", "parallel", "arbitrary"),
            vmem_limit_bytes=_vmem_limit(),
        ),
    )(valid_lens, q_proj, k_proj, v_proj)


# -----------------------------------------------------------------------------
# One-time weight preparation (hoisted out of the forward pass):
#   * bf16 weights,
#   * 1/sqrt(head_dim) folded into W_q,
#   * fused W_qkv / W_kv for the self-attention / shared-KV fast paths.
# -----------------------------------------------------------------------------
def prepare_mha_weights(wq, wk, wv, wo, num_heads):
    H = wq.shape[1]
    head_dim = H // num_heads
    scale = jnp.float32(1.0 / math.sqrt(head_dim))
    wq_s = wq.astype(jnp.float32) * scale
    params = {
        "num_heads": num_heads,
        "wq": wq_s.astype(jnp.bfloat16),
        "wk": wk.astype(jnp.bfloat16),
        "wv": wv.astype(jnp.bfloat16),
        "wo": wo.astype(jnp.bfloat16),
    }
    if wq.shape[0] == wk.shape[0] == wv.shape[0]:
        params["wqkv"] = jnp.concatenate(
            [wq_s, wk.astype(jnp.float32), wv.astype(jnp.float32)], axis=1
        ).astype(jnp.bfloat16)
    if wk.shape[0] == wv.shape[0]:
        params["wkv"] = jnp.concatenate(
            [wk.astype(jnp.float32), wv.astype(jnp.float32)], axis=1
        ).astype(jnp.bfloat16)
    return params


# -----------------------------------------------------------------------------
# Full MultiHeadAttention forward
# -----------------------------------------------------------------------------
def multi_head_attention(queries, keys, values, valid_lens, params,
                         *, attn_tile_q=512, attn_tile_k=512):
    num_heads = params["num_heads"]
    wq, wk, wv, wo = params["wq"], params["wk"], params["wv"], params["wo"]
    B, Sq, _ = queries.shape
    Sk = keys.shape[1]
    H = wq.shape[1]

    q2 = queries.reshape(B * Sq, -1).astype(jnp.bfloat16)
    k2 = keys.reshape(B * Sk, -1).astype(jnp.bfloat16)
    v2 = values.reshape(B * Sk, -1).astype(jnp.bfloat16)

    if (queries is keys) and (keys is values) and ("wqkv" in params):
        # self-attention: one fused matmul, 3H-wide lane-dense output
        qkv = linear(q2, params["wqkv"])
        q_p, k_p, v_p = qkv[:, :H], qkv[:, H:2 * H], qkv[:, 2 * H:]
    elif (keys is values) and ("wkv" in params):
        # shared K/V source: fuse the K and V projections
        q_p = linear(q2, wq)
        kv = linear(k2, params["wkv"])
        k_p, v_p = kv[:, :H], kv[:, H:]
    else:
        q_p = linear(q2, wq)
        k_p = linear(k2, wk)
        v_p = linear(v2, wv)

    if valid_lens is None:
        vl = jnp.full((B,), Sk, dtype=jnp.int32)          # no masking
    else:
        # all heads of a batch share the same valid length -> no repeat_interleave
        vl = jnp.minimum(valid_lens.astype(jnp.int32), Sk)

    attn = dot_product_attention(
        q_p.reshape(B, Sq, H), k_p.reshape(B, Sk, H), v_p.reshape(B, Sk, H),
        vl, num_heads, tile_q=attn_tile_q, tile_k=attn_tile_k)       # (B,Sq,H) bf16

    out = linear(attn.reshape(B * Sq, H), wo, out_dtype=jnp.float32)
    return out.reshape(B, Sq, H)


# -----------------------------------------------------------------------------
# Pure-JAX f32 reference (mirrors the PyTorch module) for tolerance checks
# -----------------------------------------------------------------------------
def mha_reference(queries, keys, values, valid_lens, wq, wk, wv, wo, num_heads):
    B, Sq, _ = queries.shape
    Sk = keys.shape[1]
    H = wq.shape[1]
    hd = H // num_heads

    def split_heads(x, S):
        return x.reshape(B, S, num_heads, hd).transpose(0, 2, 1, 3)

    q = split_heads(queries @ wq, Sq)
    k = split_heads(keys @ wk, Sk)
    v = split_heads(values @ wv, Sk)
    scores = jnp.einsum("bhqd,bhkd->bhqk", q, k) / math.sqrt(hd)
    if valid_lens is not None:
        mask = jnp.arange(Sk)[None, None, None, :] < valid_lens[:, None, None, None]
        scores = jnp.where(mask, scores, jnp.float32(-1000000.0))
    p = jax.nn.softmax(scores, axis=-1)
    out = jnp.einsum("bhqk,bhkd->bhqd", p, v)
    out = out.transpose(0, 2, 1, 3).reshape(B, Sq, H)
    return out @ wo


# -----------------------------------------------------------------------------
if __name__ == "__main__":
    key = jax.random.PRNGKey(0)
    ks = jax.random.split(key, 12)

    def init_w(k_, fan_in, fan_out):
        # nn.Linear default init: U(-1/sqrt(fan_in), 1/sqrt(fan_in)); stored (in, out)
        bound = 1.0 / math.sqrt(fan_in)
        return jax.random.uniform(k_, (fan_in, fan_out), jnp.float32, -bound, bound)

    # -------- config A: module's natural small shapes (single-tile path) -----
    B, Sq, Sk = 2, 8, 8
    query_size = key_size = value_size = 16
    num_hiddens, num_heads = 32, 4

    queries = jax.random.normal(ks[0], (B, Sq, query_size), jnp.float32)
    keys_in = jax.random.normal(ks[1], (B, Sk, key_size), jnp.float32)
    values_in = jax.random.normal(ks[2], (B, Sk, value_size), jnp.float32)
    valid_lens = jnp.array([3, 6], dtype=jnp.int32)

    wq = init_w(ks[3], query_size, num_hiddens)
    wk = init_w(ks[4], key_size, num_hiddens)
    wv = init_w(ks[5], value_size, num_hiddens)
    wo = init_w(ks[6], num_hiddens, num_hiddens)
    params = prepare_mha_weights(wq, wk, wv, wo, num_heads)

    out_cross = multi_head_attention(queries, keys_in, values_in, valid_lens, params)
    out_self = multi_head_attention(queries, queries, queries, valid_lens, params)
    jax.block_until_ready((out_cross, out_self))

    ref_cross = mha_reference(queries, keys_in, values_in, valid_lens,
                              wq, wk, wv, wo, num_heads)
    ref_self = mha_reference(queries, queries, queries, valid_lens,
                             wq, wk, wv, wo, num_heads)
    assert out_cross.shape == (B, Sq, num_hiddens)
    assert out_self.shape == (B, Sq, num_hiddens)
    assert bool(jnp.isfinite(out_cross).all()) and bool(jnp.isfinite(out_self).all())
    # bf16 end-to-end vs f32 reference -> loose tolerance
    assert float(jnp.max(jnp.abs(out_cross - ref_cross))) < 0.1
    assert float(jnp.max(jnp.abs(out_self - ref_self))) < 0.1

    # -------- config B: exercises the Sq/Sk (flash-style) tiled path ---------
    B2, S2 = 2, 256
    feat2, hid2, heads2 = 64, 128, 4
    x2 = jax.random.normal(ks[7], (B2, S2, feat2), jnp.float32)
    vl2 = jnp.array([100, 200], dtype=jnp.int32)
    wq2 = init_w(ks[8], feat2, hid2)
    wk2 = init_w(ks[9], feat2, hid2)
    wv2 = init_w(ks[10], feat2, hid2)
    wo2 = init_w(ks[11], hid2, hid2)
    params2 = prepare_mha_weights(wq2, wk2, wv2, wo2, heads2)

    out2 = multi_head_attention(x2, x2, x2, vl2, params2,
                                attn_tile_q=128, attn_tile_k=128)
    jax.block_until_ready(out2)
    ref2 = mha_reference(x2, x2, x2, vl2, wq2, wk2, wv2, wo2, heads2)
    assert out2.shape == (B2, S2, hid2)
    assert bool(jnp.isfinite(out2).all())
    assert float(jnp.max(jnp.abs(out2 - ref2))) < 0.1

    print("KERNEL_OK")
</pallas_src>

<mosaic_0001>
module attributes {stable_mosaic.version = 11 : i64} {
  func.func @_matmul_kernel(%arg0: i32, %arg1: i32, %arg2: memref<16x16xbf16, #tpu.memory_space<vmem>>, %arg3: memref<16x32xbf16, #tpu.memory_space<vmem>>, %arg4: memref<16x32xbf16, #tpu.memory_space<vmem>>) attributes {dimension_semantics = [#tpu.dimension_semantics<parallel>, #tpu.dimension_semantics<parallel>], iteration_bounds = array<i64: 1, 1>, scalar_prefetch = 0 : i64, scratch_operands = 0 : i64, tpu.core_type = #tpu.core_type<tc>, window_params = [{transform_indices = @transform_0, window_bounds = array<i64: 16, 16>}, {transform_indices = @transform_1, window_bounds = array<i64: 16, 32>}, {transform_indices = @transform_2, window_bounds = array<i64: 16, 32>}]} {
    %c0 = arith.constant 0 : index
    %c0_0 = arith.constant 0 : index
    %0 = vector.load %arg2[%c0, %c0_0] : memref<16x16xbf16, #tpu.memory_space<vmem>>, vector<16x16xbf16>
    %c0_1 = arith.constant 0 : index
    %c0_2 = arith.constant 0 : index
    %1 = vector.load %arg3[%c0_1, %c0_2] : memref<16x32xbf16, #tpu.memory_space<vmem>>, vector<16x32xbf16>
    %cst = arith.constant dense<0.000000e+00> : vector<16x32xf32>
    %2 = tpu.matmul %0, %1, %cst {dimension_numbers = #tpu.dot_dimension_numbers<[1], [0], [0], [1], [0, 0, 1, 1], [], []>} : vector<16x16xbf16>, vector<16x32xbf16>, vector<16x32xf32> -> vector<16x32xf32>
    %3 = arith.truncf %2 : vector<16x32xf32> to vector<16x32xbf16>
    %c0_3 = arith.constant 0 : index
    %c0_4 = arith.constant 0 : index
    %4 = vector.load %arg4[%c0_3, %c0_4] : memref<16x32xbf16, #tpu.memory_space<vmem>>, vector<16x32xbf16>
    tpu.vector_store %arg4[%c0_3, %c0_4], %3 {strides = array<i32>} : memref<16x32xbf16, #tpu.memory_space<vmem>>, vector<16x32xbf16>,
    return
  }
  func.func @transform_0(%arg0: i32, %arg1: i32) -> (i32, i32) {
    %c0_i32 = arith.constant 0 : i32
    %c0_i32_0 = arith.constant 0 : i32
    return %arg0, %c0_i32 : i32, i32
  }
  func.func @transform_1(%arg0: i32, %arg1: i32) -> (i32, i32) {
    %c0_i32 = arith.constant 0 : i32
    %c0_i32_0 = arith.constant 0 : i32
    return %c0_i32, %arg1 : i32, i32
  }
  func.func @transform_2(%arg0: i32, %arg1: i32) -> (i32, i32) {
    %c0_i32 = arith.constant 0 : i32
    return %arg0, %arg1 : i32, i32
  }
}

</mosaic_0001>

<llo_original>
// kernel: tpu_custom_call.1
$region0: #{tpu_custom_call.1}
  #allocation0 [shape = 'u32[]', space=smem, size = 0x4, offset = 0x4, fixed_abs, tag = 'smem constant byte address 0x4 - core index']
  #allocation1 [shape = 'u32[144,128]{1,0:T(1,128)}', space=vmem, size = 0x12000, scoped, tag = 'internal scratch']
  %s0 = inlined_call_operand.hbm [shape: bf16[16,16], index: 0, kind: input, shape index: {}]
  %s1 = inlined_call_operand.hbm [shape: bf16[16,32], index: 1, kind: input, shape index: {}]
  %s2 = inlined_call_operand.hbm [shape: bf16[16,32], index: 2, kind: output, shape index: {}]
  %s3 = sld [smem:[#allocation0]]
  $region26: #{tpu_custom_call.1} parent=0
    _
  %s5 = ssub.s32 1, %s3
  %s6 = scalar_select 0, %s5, %s3
  $region1: #{tpu_custom_call.1} parent=0
    #allocation2 [shape = 'u8[4096]{0}', space=vmem, size = 0x1000, scoped, tag = 'input window, operand 0, single buffered']
    #allocation3 [shape = 's32[1]{0}', space=sflag, size = 0x4, scoped, tag = 'scoped memory for tpu_custom_call.1']
    #allocation4 [shape = 's32[1]{0}', space=sflag, size = 0x4, scoped, tag = 'scoped memory for tpu_custom_call.1']
    #allocation5 [shape = 'u8[4096]{0}', space=vmem, size = 0x1000, scoped, tag = 'input window, operand 1, single buffered']
    #allocation6 [shape = 's32[1]{0}', space=sflag, size = 0x4, scoped, tag = 'scoped memory for tpu_custom_call.1']
    #allocation7 [shape = 'u8[4096]{0}', space=vmem, size = 0x1000, scoped, tag = 'output window, operand 0, single buffered']
    %7 = vsyncpa [#allocation3], 0
    %8 = vsyncpa [#allocation6], 0
    %9 = vsyncpa [#allocation4], 0
    // Predicated region
    $region2: #{tpu_custom_call.1} parent=1 // pred_check
      _
    $region3: #{tpu_custom_call.1} parent=1 // pred_check_branch
      %11 = sbr.rel (0) target = $region5
    $region4: #{tpu_custom_call.1} parent=1 // pred_region
      %s13 = ssub.s32 128, 128
      %14 = vsyncadd [#allocation3], %s13
      %s15 = sshll.u32 [#allocation2], 4
      %s16 = int_to_ptr.vmem [resolvable:$true] %s15
      %21 = dma.hbm_to_vmem [thread:$0]  %s0, 128, %s16, [#allocation3], 64, 64, 4
    $region5: #{tpu_custom_call.1} parent=1 // pred_fallthru
      _
    // Predicated region
    $region6: #{tpu_custom_call.1} parent=1 // pred_check
      _
    $region7: #{tpu_custom_call.1} parent=1 // pred_check_branch
      %23 = sbr.rel (0) target = $region9
    $region8: #{tpu_custom_call.1} parent=1 // pred_region
      %s25 = ssub.s32 128, 128
      %26 = vsyncadd [#allocation6], %s25
      %s27 = sshll.u32 [#allocation5], 4
      %s28 = int_to_ptr.vmem [resolvable:$true] %s27
      %33 = dma.hbm_to_vmem [thread:$0]  %s1, 128, %s28, [#allocation6], 64, 64, 4
    $region9: #{tpu_custom_call.1} parent=1 // pred_fallthru
      _
    // Predicated region
    $region10: #{tpu_custom_call.1} parent=1 // pred_check
      _
    $region11: #{tpu_custom_call.1} parent=1 // pred_check_branch
      %35 = sbr.rel (0) target = $region13
    $region12: #{tpu_custom_call.1} parent=1 // pred_region
      %36 = dma.done [#allocation3], 128
    $region13: #{tpu_custom_call.1} parent=1 // pred_fallthru
      _
    // Predicated region
    $region14: #{tpu_custom_call.1} parent=1 // pred_check
      _
    $region15: #{tpu_custom_call.1} parent=1 // pred_check_branch
      %38 = sbr.rel (0) target = $region17
    $region16: #{tpu_custom_call.1} parent=1 // pred_region
      %39 = dma.done [#allocation6], 128
    $region17: #{tpu_custom_call.1} parent=1 // pred_fallthru
      _
    %v41 = vld [vmem:[#allocation2] sm:$0xf]
    %v42 = vld [vmem:[#allocation2 + $0x4] sm:$0xf]
    %v43 = vld [vmem:[#allocation5] sm:$0xf]
    %v44 = vld [vmem:[#allocation5 + $0x4] sm:$0xf]
    %v47 = vunpack.c.l.b16 %v41
    %v48 = vunpack.c.l.b16 %v42
    %v49 = vpack.c.b16 %v48, %v47
    %v52 = vunpack.c.l.b16 %v43
    %v53 = vunpack.c.l.b16 %v44
    %v54 = vpack.c.b16 %v53, %v52
    %vm56 = vcmask 130048
    %v58 = vsel %vm56, %v49, 0
    %60 = vmatprep.subr.bf16.mxu0 0
    %61 = vmatpush1.bf16.msra.mxu0 %v54
    %62 = vmatprep.subr.bf16.mxu0 0
    %63 = vmatpush1.bf16.msra.mxu0 0
    %64 = vmatprep.subr.bf16.mxu0 0
    %65 = vmatpush1.bf16.msra.mxu0 0
    %66 = vmatprep.subr.bf16.mxu0 0
    %67 = vmatpush1.bf16.msra.mxu0 0
    %68 = vmatprep.subr.bf16.mxu0 0
    %69 = vmatpush1.bf16.msra.mxu0 0
    %70 = vmatprep.subr.bf16.mxu0 0
    %71 = vmatpush1.bf16.msra.mxu0 0
    %72 = vmatprep.subr.bf16.mxu0 0
    %73 = vmatpush1.bf16.msra.mxu0 0
    %74 = vmatprep.subr.bf16.mxu0 0
    %75 = vmatpush1.bf16.msra.mxu0 0
    %76 = vmatprep.subr.bf16.mxu0 0
    %77 = vmatpush1.bf16.msra.mxu0 0
    %78 = vmatprep.subr.bf16.mxu0 0
    %79 = vmatpush1.bf16.msra.mxu0 0
    %80 = vmatprep.subr.bf16.mxu0 0
    %81 = vmatpush1.bf16.msra.mxu0 0
    %82 = vmatprep.subr.bf16.mxu0 0
    %83 = vmatpush1.bf16.msra.mxu0 0
    %84 = vmatprep.subr.bf16.mxu0 0
    %85 = vmatpush1.bf16.msra.mxu0 0
    %86 = vmatprep.subr.bf16.mxu0 0
    %87 = vmatpush1.bf16.msra.mxu0 0
    %88 = vmatprep.subr.bf16.mxu0 0
    %89 = vmatpush1.bf16.msra.mxu0 0
    %90 = vmatprep.subr.bf16.mxu0 0
    %91 = vmatpush1.bf16.msra.mxu0 0
    %92 = vmatprep.mubr.bf16.mxu0 0
    %93 = vmatmul.mubr.bf16.gmra.mrb[0].mxu0 %v58
    %v94 = vpop.f32.mrb[0].mxu0
    %v95 = vadd.f32 0.0, %v94
    %v96 = vpop.f32.mrb[0].mxu0
    %v97 = vpop.f32.mrb[0].mxu0
    %v98 = vadd.f32 0.0, %v97
    %v99 = vpop.f32.mrb[0].mxu0
    %100 = vdwg.mxu0
    %v101 = vpack.c.bf16 %v98, %v95
    %v103 = vunpack.c.l.b16 %v101
    %v104 = vunpack.c.h.b16 %v101
    %v105 = vpack.c.b16 %v103, %v103
    %v106 = vpack.c.b16 %v104, %v104
    %vm109 = vcmask 257024
    %110 = vst.msk [vmem:[#allocation7] sm:$0xf] %vm109, %v105
    %111 = vst.msk [vmem:[#allocation7 + $0x4] sm:$0xf] %vm109, %v106
    // Predicated region
    $region18: #{tpu_custom_call.1} parent=1 // pred_check
      _
    $region19: #{tpu_custom_call.1} parent=1 // pred_check_branch
      %113 = sbr.rel (0) target = $region21
    $region20: #{tpu_custom_call.1} parent=1 // pred_region
      %s115 = ssub.s32 128, 128
      %116 = vsyncadd [#allocation4], %s115
      %s117 = sshll.u32 [#allocation7], 4
      %s118 = int_to_ptr.vmem [resolvable:$true] %s117
      %123 = dma.vmem_to_hbm [thread:$0]  %s118, 128, %s2, [#allocation4], 64, 64, 4
    $region21: #{tpu_custom_call.1} parent=1 // pred_fallthru
      _
    // Predicated region
    $region22: #{tpu_custom_call.1} parent=1 // pred_check
      _
    $region23: #{tpu_custom_call.1} parent=1 // pred_check_branch
      %125 = sbr.rel (0) target = $region25
    $region24: #{tpu_custom_call.1} parent=1 // pred_region
      %126 = dma.done [#allocation4], 128
    $region25: #{tpu_custom_call.1} parent=1 // pred_fallthru
      _
    %127 = vsyncpa [#allocation3], 1
    %128 = vsyncpa [#allocation6], 1
    %129 = vsyncpa [#allocation4], 1

</llo_original>
